<compile_context>
chip_gen: v7x
topology: tpu7x:2x2x1
jax: 0.10.0
libtpu: 0.0.40
codegen_flags: <defaults>
</compile_context>

<pallas_src>
import functools

import numpy as np

import jax
import jax.numpy as jnp
from jax.experimental import pallas as pl
from jax.experimental.pallas import tpu as pltpu

EPS = 1e-5          # nn.BatchNorm2d default eps
NEG_SLOPE = 0.2     # nn.LeakyReLU(0.2)


def _leaky_relu(x):
    return jnp.where(x > 0, x, NEG_SLOPE * x)


def residual_block_kernel(xcat_ref,            # (R, 3*W*Cin)        bf16  im2col'ed input rows
                          w1s_ref,             # (3*W*Cin, 2*W*Cout) bf16  conv1 bands + 1x1 shortcut
                          w2_ref,              # (3*W*Cout, W*Cout)  bf16  conv2 bands stacked on K
                          g1_ref, be1_ref,     # (1, W*Cout) f32 lane-expanded BN params
                          g2_ref, be2_ref,
                          gs_ref, bes_ref,
                          out_ref,             # (R, W*Cout) f32 lane-dense output
                          *, inv_count, cout, height, width):
    R, WCout = out_ref.shape
    H = height

    def batchnorm(act, gamma_l, beta_l):
        # act: (R, W*Cout) f32.  Train-mode BN, one-pass stats.
        # Sublane (row) reduction first, then the channel-group reduction across
        # the W lane replicas via XLU lane rolls -- no MXU work, math in f32.
        s = jnp.concatenate(
            [jnp.sum(act, axis=0, keepdims=True),
             jnp.sum(act * act, axis=0, keepdims=True)], axis=0)    # (2, W*Cout)
        if width & (width - 1) == 0:
            shift = cout
            while shift < WCout:                 # log2(W) roll+add steps
                s = s + pltpu.roll(s, shift, axis=1)
                shift *= 2
        else:                                    # generic fallback: W-1 rolls
            tot = s
            for k in range(1, width):
                tot = tot + pltpu.roll(s, k * cout, axis=1)
            s = tot
        mean = s[0:1, :] * inv_count
        var = s[1:2, :] * inv_count - mean * mean
        # TODO(synk): one-pass variance can cancel badly if |mean| >> std; use a
        #             two-pass / shifted formulation for non-centered inputs.
        scale = gamma_l * jax.lax.rsqrt(var + EPS)   # gamma * rsqrt folded once
        off = beta_l - mean * scale
        return act * scale + off

    # ---- conv1 (3 kh-taps im2col'ed along K) fused with the 1x1 shortcut -----------
    acc = jnp.dot(xcat_ref[...], w1s_ref[...], preferred_element_type=jnp.float32)
    # conv biases omitted: exactly cancelled by train-mode BN mean subtraction.
    h1 = _leaky_relu(batchnorm(acc[:, :WCout], g1_ref[...], be1_ref[...]))
    res = batchnorm(acc[:, WCout:], gs_ref[...], bes_ref[...])

    # ---- conv2: +/-1-row taps via sublane rolls + per-image boundary masks ----------
    h_idx = jax.lax.broadcasted_iota(jnp.int32, (R, WCout), 0) % H
    up = jnp.where(h_idx > 0, pltpu.roll(h1, 1, axis=0), 0.0)            # row h-1
    down = jnp.where(h_idx < H - 1, pltpu.roll(h1, R - 1, axis=0), 0.0)  # row h+1 (shift -1)
    x2 = jnp.concatenate([up, h1, down], axis=1).astype(jnp.bfloat16)    # (R, 3*W*Cout)
    acc2 = jnp.dot(x2, w2_ref[...], preferred_element_type=jnp.float32)
    h2 = batchnorm(acc2, g2_ref[...], be2_ref[...])

    # ---- residual add + final LeakyReLU, lane-dense unmasked store ------------------
    out_ref[...] = _leaky_relu(h2 + res)


def _band_matrices(w_hwio, width):
    """w_hwio: (3, 3, Ci, Co) -> (3, width*Ci, width*Co): one banded matmul weight
    per kernel row kh, encoding the 3 kw taps and the zero padding along W."""
    _, _, ci, co = w_hwio.shape
    mats = []
    for kh in range(3):
        b = jnp.zeros((width, ci, width, co), w_hwio.dtype)
        for kw in range(3):
            # sel[w_in, w_out] = 1 iff w_in == w_out + (kw - 1), clipped to range
            sel = jnp.eye(width, k=-(kw - 1), dtype=w_hwio.dtype)
            b = b + sel[:, None, :, None] * w_hwio[kh, kw][None, :, None, :]
        mats.append(b.reshape(width * ci, width * co))
    return jnp.stack(mats)


@jax.jit
def residual_block(x_nchw, params):
    """x_nchw: (N, Cin, H, W) float32. Returns (N, Cout, H, W) float32."""
    x = jnp.transpose(x_nchw, (0, 2, 3, 1))                       # -> NHWC
    N, H, W, Cin = x.shape
    Cout = params["w1"].shape[-1]
    WCin, WCout = W * Cin, W * Cout

    # Lane-dense row layout, H padded by 1, shipped in bf16 (all consumers are
    # bf16 MXU operands), then im2col'ed over the 3 kernel rows along K.
    xrow = jnp.pad(x.astype(jnp.bfloat16),
                   ((0, 0), (1, 1), (0, 0), (0, 0))).reshape(N, H + 2, WCin)
    xcat = jnp.concatenate([xrow[:, 0:H], xrow[:, 1:H + 1], xrow[:, 2:H + 2]],
                           axis=-1).reshape(N * H, 3 * WCin)      # (R, 3*W*Cin)

    # Banded conv weights (W padding baked in) + block-diagonal 1x1 shortcut.
    b1 = _band_matrices(params["w1"], W)                          # (3, WCin, WCout) f32
    b2 = _band_matrices(params["w2"], W)                          # (3, WCout, WCout)
    eye_w = jnp.eye(W, dtype=params["ws"].dtype)
    bs = (eye_w[:, None, :, None] * params["ws"][None, :, None, :]
          ).reshape(WCin, WCout)                                  # 1x1 conv as block-diag

    # Fused conv1 + shortcut weight: K = 3*W*Cin taps, N = 2*W*Cout outputs.
    zeros = jnp.zeros((WCin, WCout), jnp.float32)
    w1s = jnp.concatenate([
        jnp.concatenate([b1[0], zeros], axis=1),
        jnp.concatenate([b1[1], bs], axis=1),      # shortcut uses the center tap only
        jnp.concatenate([b1[2], zeros], axis=1),
    ], axis=0).astype(jnp.bfloat16)                               # (3*WCin, 2*WCout)
    w2c = jnp.concatenate([b2[0], b2[1], b2[2]], axis=0
                          ).astype(jnp.bfloat16)                  # (3*WCout, WCout)

    lane = lambda v: jnp.tile(v, (W,)).reshape(1, WCout)          # per-channel -> per-lane
    args = (xcat, w1s, w2c,
            lane(params["g1"]), lane(params["be1"]),
            lane(params["g2"]), lane(params["be2"]),
            lane(params["gs"]), lane(params["bes"]))
    # conv biases b1/b2/bs are intentionally not passed: train-mode BN cancels them.

    vmem = pl.BlockSpec(memory_space=pltpu.MemorySpace.VMEM)
    out2d = pl.pallas_call(
        functools.partial(residual_block_kernel,
                          inv_count=1.0 / float(N * H * W),
                          cout=Cout, height=H, width=W),
        out_shape=jax.ShapeDtypeStruct((N * H, WCout), jnp.float32),
        in_specs=[vmem] * len(args),
        out_specs=vmem,
        compiler_params=pltpu.CompilerParams(vmem_limit_bytes=32 * 1024 * 1024),
    )(*args)

    out = out2d.reshape(N, H, W, Cout)                            # pure metadata reshape
    return jnp.transpose(out, (0, 3, 1, 2))                       # -> NCHW


# ----------------------------- pure-JAX reference -------------------------------------
def _ref_forward(x_nchw, params):
    x = jnp.transpose(x_nchw, (0, 2, 3, 1))

    def conv(h, w, b):
        y = jax.lax.conv_general_dilated(
            h.astype(jnp.bfloat16), w.astype(jnp.bfloat16),
            window_strides=(1, 1), padding="SAME",
            dimension_numbers=("NHWC", "HWIO", "NHWC"),
            preferred_element_type=jnp.float32)
        return y + b.reshape(1, 1, 1, -1)

    def bn(h, g, be):
        m = h.mean(axis=(0, 1, 2), keepdims=True)
        v = ((h - m) ** 2).mean(axis=(0, 1, 2), keepdims=True)
        return (h - m) * jax.lax.rsqrt(v + EPS) * g.reshape(1, 1, 1, -1) \
               + be.reshape(1, 1, 1, -1)

    lrelu = lambda h: jnp.where(h > 0, h, NEG_SLOPE * h)

    out = lrelu(bn(conv(x, params["w1"], params["b1"]), params["g1"], params["be1"]))
    out = bn(conv(out, params["w2"], params["b2"]), params["g2"], params["be2"])
    res = bn(conv(x, params["ws"].reshape(1, 1, *params["ws"].shape), params["bs"]),
             params["gs"], params["bes"])
    out = lrelu(out + res)
    return jnp.transpose(out, (0, 3, 1, 2))


def make_params(key, cin, cout):
    ks = jax.random.split(key, 10)
    return {
        "w1": 0.2 * jax.random.normal(ks[0], (3, 3, cin, cout), jnp.float32),
        "b1": 0.1 * jax.random.normal(ks[1], (cout,), jnp.float32),
        "g1": 1.0 + 0.1 * jax.random.normal(ks[2], (cout,), jnp.float32),
        "be1": 0.1 * jax.random.normal(ks[3], (cout,), jnp.float32),
        "w2": 0.2 * jax.random.normal(ks[4], (3, 3, cout, cout), jnp.float32),
        "b2": 0.1 * jax.random.normal(ks[5], (cout,), jnp.float32),
        "g2": 1.0 + 0.1 * jax.random.normal(ks[6], (cout,), jnp.float32),
        "be2": 0.1 * jax.random.normal(ks[7], (cout,), jnp.float32),
        "ws": 0.2 * jax.random.normal(ks[8], (cin, cout), jnp.float32),
        "bs": 0.1 * jax.random.normal(ks[9], (cout,), jnp.float32),
        "gs": jnp.ones((cout,), jnp.float32),
        "bes": jnp.zeros((cout,), jnp.float32),
    }


if __name__ == "__main__":
    N, CIN, COUT, H, W = 2, 4, 8, 16, 16
    key = jax.random.PRNGKey(0)
    kx, kp = jax.random.split(key)
    x = jax.random.normal(kx, (N, CIN, H, W), jnp.float32)        # NCHW, like PyTorch
    params = make_params(kp, CIN, COUT)

    out = jax.block_until_ready(residual_block(x, params))
    ref = jax.block_until_ready(_ref_forward(x, params))

    assert out.shape == (N, COUT, H, W), out.shape
    err = jnp.max(jnp.abs(out - ref))
    assert jnp.allclose(out, ref, atol=5e-3, rtol=5e-3), f"max abs err {err}"

    print("KERNEL_OK")
</pallas_src>

<mosaic_0001>
module attributes {stable_mosaic.version = 11 : i64} {
  func.func @residual_block_kernel(%arg0: memref<32x192xbf16, #tpu.memory_space<vmem>>, %arg1: memref<192x256xbf16, #tpu.memory_space<vmem>>, %arg2: memref<384x128xbf16, #tpu.memory_space<vmem>>, %arg3: memref<1x128xf32, #tpu.memory_space<vmem>>, %arg4: memref<1x128xf32, #tpu.memory_space<vmem>>, %arg5: memref<1x128xf32, #tpu.memory_space<vmem>>, %arg6: memref<1x128xf32, #tpu.memory_space<vmem>>, %arg7: memref<1x128xf32, #tpu.memory_space<vmem>>, %arg8: memref<1x128xf32, #tpu.memory_space<vmem>>, %arg9: memref<32x128xf32, #tpu.memory_space<vmem>>) attributes {dimension_semantics = [], scalar_prefetch = 0 : i64, scratch_operands = 0 : i64, tpu.core_type = #tpu.core_type<tc>} {
    %c0 = arith.constant 0 : index
    %c0_0 = arith.constant 0 : index
    %0 = vector.load %arg0[%c0, %c0_0] : memref<32x192xbf16, #tpu.memory_space<vmem>>, vector<32x192xbf16>
    %c0_1 = arith.constant 0 : index
    %c0_2 = arith.constant 0 : index
    %1 = vector.load %arg1[%c0_1, %c0_2] : memref<192x256xbf16, #tpu.memory_space<vmem>>, vector<192x256xbf16>
    %cst = arith.constant dense<0.000000e+00> : vector<32x256xf32>
    %2 = tpu.matmul %0, %1, %cst {dimension_numbers = #tpu.dot_dimension_numbers<[1], [0], [0], [1], [0, 0, 1, 1], [], []>} : vector<32x192xbf16>, vector<192x256xbf16>, vector<32x256xf32> -> vector<32x256xf32>
    %3 = vector.extract_strided_slice %2 {offsets = [0, 0], sizes = [32, 128], strides = [1, 1]} : vector<32x256xf32> to vector<32x128xf32>
    %c0_3 = arith.constant 0 : index
    %c0_4 = arith.constant 0 : index
    %4 = vector.load %arg3[%c0_3, %c0_4] : memref<1x128xf32, #tpu.memory_space<vmem>>, vector<1x128xf32>
    %c0_5 = arith.constant 0 : index
    %c0_6 = arith.constant 0 : index
    %5 = vector.load %arg4[%c0_5, %c0_6] : memref<1x128xf32, #tpu.memory_space<vmem>>, vector<1x128xf32>
    %cst_7 = arith.constant dense<0.000000e+00> : vector<128xf32>
    %6 = vector.multi_reduction <add>, %3, %cst_7 [0] : vector<32x128xf32> to vector<128xf32>
    %7 = vector.shape_cast %6 : vector<128xf32> to vector<1x128xf32>
    %8 = arith.mulf %3, %3 : vector<32x128xf32>
    %cst_8 = arith.constant dense<0.000000e+00> : vector<128xf32>
    %9 = vector.multi_reduction <add>, %8, %cst_8 [0] : vector<32x128xf32> to vector<128xf32>
    %10 = vector.shape_cast %9 : vector<128xf32> to vector<1x128xf32>
    %11 = tpu.concatenate %7, %10 in 0 : vector<1x128xf32>, vector<1x128xf32> -> vector<2x128xf32>
    %c8_i32 = arith.constant 8 : i32
    %12 = tpu.dynamic_rotate %11 by %c8_i32 dim 1 : vector<2x128xf32>, i32 -> vector<2x128xf32>
    %13 = arith.addf %11, %12 : vector<2x128xf32>
    %c16_i32 = arith.constant 16 : i32
    %14 = tpu.dynamic_rotate %13 by %c16_i32 dim 1 : vector<2x128xf32>, i32 -> vector<2x128xf32>
    %15 = arith.addf %13, %14 : vector<2x128xf32>
    %c32_i32 = arith.constant 32 : i32
    %16 = tpu.dynamic_rotate %15 by %c32_i32 dim 1 : vector<2x128xf32>, i32 -> vector<2x128xf32>
    %17 = arith.addf %15, %16 : vector<2x128xf32>
    %c64_i32 = arith.constant 64 : i32
    %18 = tpu.dynamic_rotate %17 by %c64_i32 dim 1 : vector<2x128xf32>, i32 -> vector<2x128xf32>
    %19 = arith.addf %17, %18 : vector<2x128xf32>
    %20 = vector.extract_strided_slice %19 {offsets = [0, 0], sizes = [1, 128], strides = [1, 1]} : vector<2x128xf32> to vector<1x128xf32>
    %cst_9 = arith.constant 0.001953125 : f32
    %21 = vector.broadcast %cst_9 : f32 to vector<1x128xf32>
    %22 = arith.mulf %20, %21 : vector<1x128xf32>
    %23 = vector.extract_strided_slice %19 {offsets = [1, 0], sizes = [1, 128], strides = [1, 1]} : vector<2x128xf32> to vector<1x128xf32>
    %cst_10 = arith.constant 0.001953125 : f32
    %24 = vector.broadcast %cst_10 : f32 to vector<1x128xf32>
    %25 = arith.mulf %23, %24 : vector<1x128xf32>
    %26 = arith.mulf %22, %22 : vector<1x128xf32>
    %27 = arith.subf %25, %26 : vector<1x128xf32>
    %cst_11 = arith.constant 9.99999974E-6 : f32
    %28 = vector.broadcast %cst_11 : f32 to vector<1x128xf32>
    %29 = arith.addf %27, %28 : vector<1x128xf32>
    %30 = math.rsqrt %29 : vector<1x128xf32>
    %31 = arith.mulf %4, %30 : vector<1x128xf32>
    %32 = arith.mulf %22, %31 : vector<1x128xf32>
    %33 = arith.subf %5, %32 : vector<1x128xf32>
    %34 = vector.broadcast %31 : vector<1x128xf32> to vector<32x128xf32>
    %35 = arith.mulf %3, %34 : vector<32x128xf32>
    %36 = vector.broadcast %33 : vector<1x128xf32> to vector<32x128xf32>
    %37 = arith.addf %35, %36 : vector<32x128xf32>
    %cst_12 = arith.constant 0.000000e+00 : f32
    %38 = vector.broadcast %cst_12 : f32 to vector<32x128xf32>
    %39 = arith.cmpf ogt, %37, %38 : vector<32x128xf32>
    %cst_13 = arith.constant 2.000000e-01 : f32
    %40 = vector.broadcast %cst_13 : f32 to vector<32x128xf32>
    %41 = arith.mulf %40, %37 : vector<32x128xf32>
    %42 = arith.select %39, %37, %41 : vector<32x128xi1>, vector<32x128xf32>
    %43 = vector.extract_strided_slice %2 {offsets = [0, 128], sizes = [32, 128], strides = [1, 1]} : vector<32x256xf32> to vector<32x128xf32>
    %c0_14 = arith.constant 0 : index
    %c0_15 = arith.constant 0 : index
    %44 = vector.load %arg7[%c0_14, %c0_15] : memref<1x128xf32, #tpu.memory_space<vmem>>, vector<1x128xf32>
    %c0_16 = arith.constant 0 : index
    %c0_17 = arith.constant 0 : index
    %45 = vector.load %arg8[%c0_16, %c0_17] : memref<1x128xf32, #tpu.memory_space<vmem>>, vector<1x128xf32>
    %cst_18 = arith.constant dense<0.000000e+00> : vector<128xf32>
    %46 = vector.multi_reduction <add>, %43, %cst_18 [0] : vector<32x128xf32> to vector<128xf32>
    %47 = vector.shape_cast %46 : vector<128xf32> to vector<1x128xf32>
    %48 = arith.mulf %43, %43 : vector<32x128xf32>
    %cst_19 = arith.constant dense<0.000000e+00> : vector<128xf32>
    %49 = vector.multi_reduction <add>, %48, %cst_19 [0] : vector<32x128xf32> to vector<128xf32>
    %50 = vector.shape_cast %49 : vector<128xf32> to vector<1x128xf32>
    %51 = tpu.concatenate %47, %50 in 0 : vector<1x128xf32>, vector<1x128xf32> -> vector<2x128xf32>
    %c8_i32_20 = arith.constant 8 : i32
    %52 = tpu.dynamic_rotate %51 by %c8_i32_20 dim 1 : vector<2x128xf32>, i32 -> vector<2x128xf32>
    %53 = arith.addf %51, %52 : vector<2x128xf32>
    %c16_i32_21 = arith.constant 16 : i32
    %54 = tpu.dynamic_rotate %53 by %c16_i32_21 dim 1 : vector<2x128xf32>, i32 -> vector<2x128xf32>
    %55 = arith.addf %53, %54 : vector<2x128xf32>
    %c32_i32_22 = arith.constant 32 : i32
    %56 = tpu.dynamic_rotate %55 by %c32_i32_22 dim 1 : vector<2x128xf32>, i32 -> vector<2x128xf32>
    %57 = arith.addf %55, %56 : vector<2x128xf32>
    %c64_i32_23 = arith.constant 64 : i32
    %58 = tpu.dynamic_rotate %57 by %c64_i32_23 dim 1 : vector<2x128xf32>, i32 -> vector<2x128xf32>
    %59 = arith.addf %57, %58 : vector<2x128xf32>
    %60 = vector.extract_strided_slice %59 {offsets = [0, 0], sizes = [1, 128], strides = [1, 1]} : vector<2x128xf32> to vector<1x128xf32>
    %cst_24 = arith.constant 0.001953125 : f32
    %61 = vector.broadcast %cst_24 : f32 to vector<1x128xf32>
    %62 = arith.mulf %60, %61 : vector<1x128xf32>
    %63 = vector.extract_strided_slice %59 {offsets = [1, 0], sizes = [1, 128], strides = [1, 1]} : vector<2x128xf32> to vector<1x128xf32>
    %cst_25 = arith.constant 0.001953125 : f32
    %64 = vector.broadcast %cst_25 : f32 to vector<1x128xf32>
    %65 = arith.mulf %63, %64 : vector<1x128xf32>
    %66 = arith.mulf %62, %62 : vector<1x128xf32>
    %67 = arith.subf %65, %66 : vector<1x128xf32>
    %cst_26 = arith.constant 9.99999974E-6 : f32
    %68 = vector.broadcast %cst_26 : f32 to vector<1x128xf32>
    %69 = arith.addf %67, %68 : vector<1x128xf32>
    %70 = math.rsqrt %69 : vector<1x128xf32>
    %71 = arith.mulf %44, %70 : vector<1x128xf32>
    %72 = arith.mulf %62, %71 : vector<1x128xf32>
    %73 = arith.subf %45, %72 : vector<1x128xf32>
    %74 = vector.broadcast %71 : vector<1x128xf32> to vector<32x128xf32>
    %75 = arith.mulf %43, %74 : vector<32x128xf32>
    %76 = vector.broadcast %73 : vector<1x128xf32> to vector<32x128xf32>
    %77 = arith.addf %75, %76 : vector<32x128xf32>
    %78 = tpu.iota {dimensions = array<i32: 0>} : vector<32x128xi32>
    %c16_i32_27 = arith.constant 16 : i32
    %c0_i32 = arith.constant 0 : i32
    %79 = arith.cmpi eq, %c16_i32_27, %c0_i32 : i32
    %c1_i32 = arith.constant 1 : i32
    %80 = arith.select %79, %c1_i32, %c16_i32_27 : i32
    %81 = vector.broadcast %80 : i32 to vector<32x128xi32>
    %82 = arith.remsi %78, %81 : vector<32x128xi32>
    %c0_i32_28 = arith.constant 0 : i32
    %83 = vector.broadcast %c0_i32_28 : i32 to vector<32x128xi32>
    %84 = arith.cmpi ne, %82, %83 : vector<32x128xi32>
    %c0_i32_29 = arith.constant 0 : i32
    %85 = vector.broadcast %c0_i32_29 : i32 to vector<32x128xi32>
    %86 = arith.cmpi slt, %82, %85 : vector<32x128xi32>
    %c0_i32_30 = arith.constant 0 : i32
    %87 = arith.cmpi slt, %80, %c0_i32_30 : i32
    %88 = vector.broadcast %87 : i1 to vector<32x128xi1>
    %89 = vector.broadcast %88 : vector<32x128xi1> to vector<32x128xi1>
    %90 = arith.xori %86, %89 : vector<32x128xi1>
    %91 = arith.andi %90, %84 : vector<32x128xi1>
    %92 = vector.broadcast %80 : i32 to vector<32x128xi32>
    %93 = arith.addi %82, %92 : vector<32x128xi32>
    %94 = arith.select %91, %93, %82 : vector<32x128xi1>, vector<32x128xi32>
    %c0_i32_31 = arith.constant 0 : i32
    %95 = vector.broadcast %c0_i32_31 : i32 to vector<32x128xi32>
    %96 = arith.cmpi sgt, %94, %95 : vector<32x128xi32>
    %c1_i32_32 = arith.constant 1 : i32
    %97 = tpu.dynamic_rotate %42 by %c1_i32_32 dim 0 : vector<32x128xf32>, i32 -> vector<32x128xf32>
    %cst_33 = arith.constant 0.000000e+00 : f32
    %98 = vector.broadcast %cst_33 : f32 to vector<32x128xf32>
    %99 = arith.select %96, %97, %98 : vector<32x128xi1>, vector<32x128xf32>
    %c15_i32 = arith.constant 15 : i32
    %100 = vector.broadcast %c15_i32 : i32 to vector<32x128xi32>
    %101 = arith.cmpi slt, %94, %100 : vector<32x128xi32>
    %c31_i32 = arith.constant 31 : i32
    %102 = tpu.dynamic_rotate %42 by %c31_i32 dim 0 : vector<32x128xf32>, i32 -> vector<32x128xf32>
    %cst_34 = arith.constant 0.000000e+00 : f32
    %103 = vector.broadcast %cst_34 : f32 to vector<32x128xf32>
    %104 = arith.select %101, %102, %103 : vector<32x128xi1>, vector<32x128xf32>
    %105 = tpu.concatenate %99, %42, %104 in 1 : vector<32x128xf32>, vector<32x128xf32>, vector<32x128xf32> -> vector<32x384xf32>
    %106 = arith.truncf %105 : vector<32x384xf32> to vector<32x384xbf16>
    %c0_35 = arith.constant 0 : index
    %c0_36 = arith.constant 0 : index
    %107 = vector.load %arg2[%c0_35, %c0_36] : memref<384x128xbf16, #tpu.memory_space<vmem>>, vector<384x128xbf16>
    %cst_37 = arith.constant dense<0.000000e+00> : vector<32x128xf32>
    %108 = tpu.matmul %106, %107, %cst_37 {dimension_numbers = #tpu.dot_dimension_numbers<[1], [0], [0], [1], [0, 0, 1, 1], [], []>} : vector<32x384xbf16>, vector<384x128xbf16>, vector<32x128xf32> -> vector<32x128xf32>
    %c0_38 = arith.constant 0 : index
    %c0_39 = arith.constant 0 : index
    %109 = vector.load %arg5[%c0_38, %c0_39] : memref<1x128xf32, #tpu.memory_space<vmem>>, vector<1x128xf32>
    %c0_40 = arith.constant 0 : index
    %c0_41 = arith.constant 0 : index
    %110 = vector.load %arg6[%c0_40, %c0_41] : memref<1x128xf32, #tpu.memory_space<vmem>>, vector<1x128xf32>
    %cst_42 = arith.constant dense<0.000000e+00> : vector<128xf32>
    %111 = vector.multi_reduction <add>, %108, %cst_42 [0] : vector<32x128xf32> to vector<128xf32>
    %112 = vector.shape_cast %111 : vector<128xf32> to vector<1x128xf32>
    %113 = arith.mulf %108, %108 : vector<32x128xf32>
    %cst_43 = arith.constant dense<0.000000e+00> : vector<128xf32>
    %114 = vector.multi_reduction <add>, %113, %cst_43 [0] : vector<32x128xf32> to vector<128xf32>
    %115 = vector.shape_cast %114 : vector<128xf32> to vector<1x128xf32>
    %116 = tpu.concatenate %112, %115 in 0 : vector<1x128xf32>, vector<1x128xf32> -> vector<2x128xf32>
    %c8_i32_44 = arith.constant 8 : i32
    %117 = tpu.dynamic_rotate %116 by %c8_i32_44 dim 1 : vector<2x128xf32>, i32 -> vector<2x128xf32>
    %118 = arith.addf %116, %117 : vector<2x128xf32>
    %c16_i32_45 = arith.constant 16 : i32
    %119 = tpu.dynamic_rotate %118 by %c16_i32_45 dim 1 : vector<2x128xf32>, i32 -> vector<2x128xf32>
    %120 = arith.addf %118, %119 : vector<2x128xf32>
    %c32_i32_46 = arith.constant 32 : i32
    %121 = tpu.dynamic_rotate %120 by %c32_i32_46 dim 1 : vector<2x128xf32>, i32 -> vector<2x128xf32>
    %122 = arith.addf %120, %121 : vector<2x128xf32>
    %c64_i32_47 = arith.constant 64 : i32
    %123 = tpu.dynamic_rotate %122 by %c64_i32_47 dim 1 : vector<2x128xf32>, i32 -> vector<2x128xf32>
    %124 = arith.addf %122, %123 : vector<2x128xf32>
    %125 = vector.extract_strided_slice %124 {offsets = [0, 0], sizes = [1, 128], strides = [1, 1]} : vector<2x128xf32> to vector<1x128xf32>
    %cst_48 = arith.constant 0.001953125 : f32
    %126 = vector.broadcast %cst_48 : f32 to vector<1x128xf32>
    %127 = arith.mulf %125, %126 : vector<1x128xf32>
    %128 = vector.extract_strided_slice %124 {offsets = [1, 0], sizes = [1, 128], strides = [1, 1]} : vector<2x128xf32> to vector<1x128xf32>
    %cst_49 = arith.constant 0.001953125 : f32
    %129 = vector.broadcast %cst_49 : f32 to vector<1x128xf32>
    %130 = arith.mulf %128, %129 : vector<1x128xf32>
    %131 = arith.mulf %127, %127 : vector<1x128xf32>
    %132 = arith.subf %130, %131 : vector<1x128xf32>
    %cst_50 = arith.constant 9.99999974E-6 : f32
    %133 = vector.broadcast %cst_50 : f32 to vector<1x128xf32>
    %134 = arith.addf %132, %133 : vector<1x128xf32>
    %135 = math.rsqrt %134 : vector<1x128xf32>
    %136 = arith.mulf %109, %135 : vector<1x128xf32>
    %137 = arith.mulf %127, %136 : vector<1x128xf32>
    %138 = arith.subf %110, %137 : vector<1x128xf32>
    %139 = vector.broadcast %136 : vector<1x128xf32> to vector<32x128xf32>
    %140 = arith.mulf %108, %139 : vector<32x128xf32>
    %141 = vector.broadcast %138 : vector<1x128xf32> to vector<32x128xf32>
    %142 = arith.addf %140, %141 : vector<32x128xf32>
    %143 = arith.addf %142, %77 : vector<32x128xf32>
    %cst_51 = arith.constant 0.000000e+00 : f32
    %144 = vector.broadcast %cst_51 : f32 to vector<32x128xf32>
    %145 = arith.cmpf ogt, %143, %144 : vector<32x128xf32>
    %cst_52 = arith.constant 2.000000e-01 : f32
    %146 = vector.broadcast %cst_52 : f32 to vector<32x128xf32>
    %147 = arith.mulf %146, %143 : vector<32x128xf32>
    %148 = arith.select %145, %143, %147 : vector<32x128xi1>, vector<32x128xf32>
    %c0_53 = arith.constant 0 : index
    %c0_54 = arith.constant 0 : index
    %149 = vector.load %arg9[%c0_53, %c0_54] : memref<32x128xf32, #tpu.memory_space<vmem>>, vector<32x128xf32>
    tpu.vector_store %arg9[%c0_53, %c0_54], %148 {strides = array<i32>} : memref<32x128xf32, #tpu.memory_space<vmem>>, vector<32x128xf32>,
    return
  }
}

</mosaic_0001>

<llo_original>
// kernel: tile.33
$region0: #{tile.33}
  #allocation0 [shape = 's32[1]{0}', space=sflag, size = 0x4, scoped, tag = 'scoped memory for tile.33']
  %s0 = inlined_call_operand.vmem [shape: f32[8], index: 0, kind: input, shape index: {}]
  %s1 = inlined_call_operand.vmem [shape: f32[16,8], index: 1, kind: output, shape index: {}]
  // Predicated region
  $region2: #{tile.33} parent=0 // pred_check
    _
  $region3: #{tile.33} parent=0 // pred_check_branch
    %3 = sbr.rel (0) target = $region5
  $region4: #{tile.33} parent=0 // pred_region
    _
  $region5: #{tile.33} parent=0 // pred_fallthru
    _
  %v4 = vld [vmem:[%s0] ss:$0 sm:$0xff]
  %5 = vst [vmem:[%s1] sm:$0xff] %v4
  %s6 = scalar_lea.vmem %s1, 8
  %7 = vst [vmem:[%s6] sm:$0xff] %v4

// kernel: tile.34
$region0: #{tile.34}
  %s0 = inlined_call_operand.vmem [shape: f32[16,8], index: 0, kind: input, shape index: {}]
  %s1 = inlined_call_operand.vmem [shape: f32[1,128], index: 1, kind: output, shape index: {}]
  $region1: #{tile.34} parent=0
    #allocation0 [shape = 'u8[4096]{0}', space=vmem, size = 0x1000, scoped, tag = 'scoped mem for output reshape']
    %v2 = vld [vmem:[%s0] sm:$0x1]
    %vm3 = vcmask 64512
    %4 = vst.msk [vmem:[#allocation0] sm:$0x1] %vm3, %v2
    %s5 = scalar_lea.vmem %s0, 15
    %v6 = vld [vmem:[%s5] sm:$0x1]
    %7 = vrot.lane.b32.xlu0 %v6, 120
    %v8 = vpop.permute.xlu0 %7
    %vm9 = vcmask 1048512
    %10 = vst.msk [vmem:[#allocation0] sm:$0x1] %vm9, %v8
    %s11 = scalar_lea.vmem %s0, 14
    %v12 = vld [vmem:[%s11] sm:$0x1]
    %13 = vrot.lane.b32.xlu0 %v12, 112
    %v14 = vpop.permute.xlu0 %13
    %vm15 = vcmask 982912
    %16 = vst.msk [vmem:[#allocation0] sm:$0x1] %vm15, %v14
    %s17 = scalar_lea.vmem %s0, 13
    %v18 = vld [vmem:[%s17] sm:$0x1]
    %19 = vrot.lane.b32.xlu0 %v18, 104
    %v20 = vpop.permute.xlu0 %19
    %vm21 = vcmask 917312
    %22 = vst.msk [vmem:[#allocation0] sm:$0x1] %vm21, %v20
    %s23 = scalar_lea.vmem %s0, 12
    %v24 = vld [vmem:[%s23] sm:$0x1]
    %25 = vrot.lane.b32.xlu0 %v24, 96
    %v26 = vpop.permute.xlu0 %25
    %vm27 = vcmask 851712
    %28 = vst.msk [vmem:[#allocation0] sm:$0x1] %vm27, %v26
    %s29 = scalar_lea.vmem %s0, 11
    %v30 = vld [vmem:[%s29] sm:$0x1]
    %31 = vrot.lane.b32.xlu0 %v30, 88
    %v32 = vpop.permute.xlu0 %31
    %vm33 = vcmask 786112
    %34 = vst.msk [vmem:[#allocation0] sm:$0x1] %vm33, %v32
    %s35 = scalar_lea.vmem %s0, 10
    %v36 = vld [vmem:[%s35] sm:$0x1]
    %37 = vrot.lane.b32.xlu0 %v36, 80
    %v38 = vpop.permute.xlu0 %37
    %vm39 = vcmask 720512
    %40 = vst.msk [vmem:[#allocation0] sm:$0x1] %vm39, %v38
    %s41 = scalar_lea.vmem %s0, 9
    %v42 = vld [vmem:[%s41] sm:$0x1]
    %43 = vrot.lane.b32.xlu0 %v42, 72
    %v44 = vpop.permute.xlu0 %43
    %vm45 = vcmask 654912
    %46 = vst.msk [vmem:[#allocation0] sm:$0x1] %vm45, %v44
    %s47 = scalar_lea.vmem %s0, 8
    %v48 = vld [vmem:[%s47] sm:$0x1]
    %49 = vrot.lane.b32.xlu0 %v48, 64
    %v50 = vpop.permute.xlu0 %49
    %vm51 = vcmask 589312
    %52 = vst.msk [vmem:[#allocation0] sm:$0x1] %vm51, %v50
    %s53 = scalar_lea.vmem %s0, 7
    %v54 = vld [vmem:[%s53] sm:$0x1]
    %55 = vrot.lane.b32.xlu0 %v54, 56
    %v56 = vpop.permute.xlu0 %55
    %vm57 = vcmask 523712
    %58 = vst.msk [vmem:[#allocation0] sm:$0x1] %vm57, %v56
    %s59 = scalar_lea.vmem %s0, 6
    %v60 = vld [vmem:[%s59] sm:$0x1]
    %61 = vrot.lane.b32.xlu0 %v60, 48
    %v62 = vpop.permute.xlu0 %61
    %vm63 = vcmask 458112
    %64 = vst.msk [vmem:[#allocation0] sm:$0x1] %vm63, %v62
    %s65 = scalar_lea.vmem %s0, 5
    %v66 = vld [vmem:[%s65] sm:$0x1]
    %67 = vrot.lane.b32.xlu0 %v66, 40
    %v68 = vpop.permute.xlu0 %67
    %vm69 = vcmask 392512
    %70 = vst.msk [vmem:[#allocation0] sm:$0x1] %vm69, %v68
    %s71 = scalar_lea.vmem %s0, 4
    %v72 = vld [vmem:[%s71] sm:$0x1]
    %73 = vrot.lane.b32.xlu0 %v72, 32
    %v74 = vpop.permute.xlu0 %73
    %vm75 = vcmask 326912
    %76 = vst.msk [vmem:[#allocation0] sm:$0x1] %vm75, %v74
    %s77 = scalar_lea.vmem %s0, 3
    %v78 = vld [vmem:[%s77] sm:$0x1]
    %79 = vrot.lane.b32.xlu0 %v78, 24
    %v80 = vpop.permute.xlu0 %79
    %vm81 = vcmask 261312
    %82 = vst.msk [vmem:[#allocation0] sm:$0x1] %vm81, %v80
    %s83 = scalar_lea.vmem %s0, 2
    %v84 = vld [vmem:[%s83] sm:$0x1]
    %85 = vrot.lane.b32.xlu0 %v84, 16
    %v86 = vpop.permute.xlu0 %85
    %vm87 = vcmask 195712
    %88 = vst.msk [vmem:[#allocation0] sm:$0x1] %vm87, %v86
    %s89 = scalar_lea.vmem %s0, 1
    %v90 = vld [vmem:[%s89] sm:$0x1]
    %91 = vrot.lane.b32.xlu0 %v90, 8
    %v92 = vpop.permute.xlu0 %91
    %vm93 = vcmask 130112
    %94 = vst.msk [vmem:[#allocation0] sm:$0x1] %vm93, %v92
    %s96 = sshllo.u32 0, 1
    %v98 = vld [vmem:[#allocation0] sm:%s96]
    %s99 = sshllo.u32 0, 1
    %100 = vst [vmem:[%s1] sm:%s99] %v98

// kernel: residual_block.1
$region0: #{residual_block.1}
  #allocation0 [shape = 'u32[]', space=smem, size = 0x4, offset = 0x4, fixed_abs, tag = 'smem constant byte address 0x4 - core index']
  #allocation1 [shape = 'u32[144,128]{1,0:T(1,128)}', space=vmem, size = 0x12000, scoped, tag = 'internal scratch']
  %s0 = inlined_call_operand.vmem [shape: bf16[32,192], index: 0, kind: input, shape index: {}]
  %s1 = inlined_call_operand.vmem [shape: bf16[192,256], index: 1, kind: input, shape index: {}]
  %s2 = inlined_call_operand.vmem [shape: bf16[384,128], index: 2, kind: input, shape index: {}]
  %s3 = inlined_call_operand.vmem [shape: f32[1,128], index: 3, kind: input, shape index: {}]
  %s4 = inlined_call_operand.vmem [shape: f32[1,128], index: 4, kind: input, shape index: {}]
  %s5 = inlined_call_operand.vmem [shape: f32[1,128], index: 5, kind: input, shape index: {}]
  %s6 = inlined_call_operand.vmem [shape: f32[1,128], index: 6, kind: input, shape index: {}]
  %s7 = inlined_call_operand.vmem [shape: f32[1,128], index: 7, kind: input, shape index: {}]
  %s8 = inlined_call_operand.vmem [shape: f32[1,128], index: 8, kind: input, shape index: {}]
  %s9 = inlined_call_operand.vmem [shape: f32[32,128], index: 9, kind: output, shape index: {}]
  %s10 = sld [smem:[#allocation0]]
  $region46: #{residual_block.1} parent=0
    _
  %s12 = ssub.s32 1, %s10
  %s13 = scalar_select 0, %s12, %s10
  // Predicated region
  $region2: #{residual_block.1} parent=0 // pred_check
    _
  $region3: #{residual_block.1} parent=0 // pred_check_branch
    %15 = sbr.rel (0) target = $region5
  $region4: #{residual_block.1} parent=0 // pred_region
    _
  $region5: #{residual_block.1} parent=0 // pred_fallthru
    _
  // Predicated region
  $region6: #{residual_block.1} parent=0 // pred_check
    _
  $region7: #{residual_block.1} parent=0 // pred_check_branch
    %17 = sbr.rel (0) target = $region9
  $region8: #{residual_block.1} parent=0 // pred_region
    _
  $region9: #{residual_block.1} parent=0 // pred_fallthru
    _
  // Predicated region
  $region10: #{residual_block.1} parent=0 // pred_check
    _
  $region11: #{residual_block.1} parent=0 // pred_check_branch
    %19 = sbr.rel (0) target = $region13
  $region12: #{residual_block.1} parent=0 // pred_region
    _
  $region13: #{residual_block.1} parent=0 // pred_fallthru
    _
  // Predicated region
  $region14: #{residual_block.1} parent=0 // pred_check
    _
  $region15: #{residual_block.1} parent=0 // pred_check_branch
    %21 = sbr.rel (0) target = $region17
  $region16: #{residual_block.1} parent=0 // pred_region
    _
  $region17: #{residual_block.1} parent=0 // pred_fallthru
    _
  // Predicated region
  $region18: #{residual_block.1} parent=0 // pred_check
    _
  $region19: #{residual_block.1} parent=0 // pred_check_branch
    %23 = sbr.rel (0) target = $region21
  $region20: #{residual_block.1} parent=0 // pred_region
    _
  $region21: #{residual_block.1} parent=0 // pred_fallthru
    _
  // Predicated region
  $region22: #{residual_block.1} parent=0 // pred_check
    _
  $region23: #{residual_block.1} parent=0 // pred_check_branch
    %25 = sbr.rel (0) target = $region25
  $region24: #{residual_block.1} parent=0 // pred_region
    _
  $region25: #{residual_block.1} parent=0 // pred_fallthru
    _
  // Predicated region
  $region26: #{residual_block.1} parent=0 // pred_check
    _
  $region27: #{residual_block.1} parent=0 // pred_check_branch
    %27 = sbr.rel (0) target = $region29
  $region28: #{residual_block.1} parent=0 // pred_region
    _
  $region29: #{residual_block.1} parent=0 // pred_fallthru
    _
  // Predicated region
  $region30: #{residual_block.1} parent=0 // pred_check
    _
  $region31: #{residual_block.1} parent=0 // pred_check_branch
    %29 = sbr.rel (0) target = $region33
  $region32: #{residual_block.1} parent=0 // pred_region
    _
  $region33: #{residual_block.1} parent=0 // pred_fallthru
    _
  // Predicated region
  $region34: #{residual_block.1} parent=0 // pred_check
    _
  $region35: #{residual_block.1} parent=0 // pred_check_branch
    %31 = sbr.rel (0) target = $region37
  $region36: #{residual_block.1} parent=0 // pred_region
    _
  $region37: #{residual_block.1} parent=0 // pred_fallthru
    _
  %v33 = vld [vmem:[%s0] sm:$0xff]
  %v34 = vld [vmem:[%s0 + $0x8] sm:$0xff]
  %v35 = vld [vmem:[%s0 + $0x10] sm:$0xff]
  %v36 = vld [vmem:[%s0 + $0x18] sm:$0xff]
  %v37 = vld [vmem:[%s1] sm:$0xff]
  %v38 = vld [vmem:[%s1 + $0x8] sm:$0xff]
  %v39 = vld [vmem:[%s1 + $0x10] sm:$0xff]
  %v40 = vld [vmem:[%s1 + $0x18] sm:$0xff]
  %v41 = vld [vmem:[%s1 + $0x20] sm:$0xff]
  %v42 = vld [vmem:[%s1 + $0x28] sm:$0xff]
  %v43 = vld [vmem:[%s1 + $0x30] sm:$0xff]
  %v44 = vld [vmem:[%s1 + $0x38] sm:$0xff]
  %v45 = vld [vmem:[%s1 + $0x40] sm:$0xff]
  %v46 = vld [vmem:[%s1 + $0x48] sm:$0xff]
  %v47 = vld [vmem:[%s1 + $0x50] sm:$0xff]
  %v48 = vld [vmem:[%s1 + $0x58] sm:$0xff]
  %v49 = vld [vmem:[%s1 + $0x60] sm:$0xff]
  %v50 = vld [vmem:[%s1 + $0x68] sm:$0xff]
  %v51 = vld [vmem:[%s1 + $0x70] sm:$0xff]
  %v52 = vld [vmem:[%s1 + $0x78] sm:$0xff]
  %v53 = vld [vmem:[%s1 + $0x80] sm:$0xff]
  %v54 = vld [vmem:[%s1 + $0x88] sm:$0xff]
  %v55 = vld [vmem:[%s1 + $0x90] sm:$0xff]
  %v56 = vld [vmem:[%s1 + $0x98] sm:$0xff]
  %v57 = vld [vmem:[%s1 + $0xa0] sm:$0xff]
  %v58 = vld [vmem:[%s1 + $0xa8] sm:$0xff]
  %v59 = vld [vmem:[%s1 + $0xb0] sm:$0xff]
  %v60 = vld [vmem:[%s1 + $0xb8] sm:$0xff]
  %v65 = vunpack.c.l.b16 %v33
  %v66 = vunpack.c.h.b16 %v33
  %v67 = vunpack.c.l.b16 %v34
  %v68 = vunpack.c.h.b16 %v34
  %v69 = vunpack.c.l.b16 %v35
  %v70 = vunpack.c.h.b16 %v35
  %v71 = vunpack.c.l.b16 %v36
  %v72 = vunpack.c.h.b16 %v36
  %v73 = vpack.c.b16 %v67, %v65
  %v74 = vpack.c.b16 %v68, %v66
  %v75 = vpack.c.b16 %v71, %v69
  %v76 = vpack.c.b16 %v72, %v70
  %v103 = vunpack.c.l.b16 %v37
  %v104 = vunpack.c.h.b16 %v37
  %v105 = vunpack.c.l.b16 %v38
  %v106 = vunpack.c.h.b16 %v38
  %v107 = vunpack.c.l.b16 %v39
  %v108 = vunpack.c.h.b16 %v39
  %v109 = vunpack.c.l.b16 %v40
  %v110 = vunpack.c.h.b16 %v40
  %v111 = vunpack.c.l.b16 %v41
  %v112 = vunpack.c.h.b16 %v41
  %v113 = vunpack.c.l.b16 %v42
  %v114 = vunpack.c.h.b16 %v42
  %v115 = vunpack.c.l.b16 %v43
  %v116 = vunpack.c.h.b16 %v43
  %v117 = vunpack.c.l.b16 %v44
  %v118 = vunpack.c.h.b16 %v44
  %v119 = vunpack.c.l.b16 %v45
  %v120 = vunpack.c.h.b16 %v45
  %v121 = vunpack.c.l.b16 %v46
  %v122 = vunpack.c.h.b16 %v46
  %v123 = vunpack.c.l.b16 %v47
  %v124 = vunpack.c.h.b16 %v47
  %v125 = vunpack.c.l.b16 %v48
  %v126 = vunpack.c.h.b16 %v48
  %v127 = vunpack.c.l.b16 %v49
  %v128 = vunpack.c.h.b16 %v49
  %v129 = vunpack.c.l.b16 %v50
  %v130 = vunpack.c.h.b16 %v50
  %v131 = vunpack.c.l.b16 %v51
  %v132 = vunpack.c.h.b16 %v51
  %v133 = vunpack.c.l.b16 %v52
  %v134 = vunpack.c.h.b16 %v52
  %v135 = vunpack.c.l.b16 %v53
  %v136 = vunpack.c.h.b16 %v53
  %v137 = vunpack.c.l.b16 %v54
  %v138 = vunpack.c.h.b16 %v54
  %v139 = vunpack.c.l.b16 %v55
  %v140 = vunpack.c.h.b16 %v55
  %v141 = vunpack.c.l.b16 %v56
  %v142 = vunpack.c.h.b16 %v56
  %v143 = vunpack.c.l.b16 %v57
  %v144 = vunpack.c.h.b16 %v57
  %v145 = vunpack.c.l.b16 %v58
  %v146 = vunpack.c.h.b16 %v58
  %v147 = vunpack.c.l.b16 %v59
  %v148 = vunpack.c.h.b16 %v59
  %v149 = vunpack.c.l.b16 %v60
  %v150 = vunpack.c.h.b16 %v60
  %v151 = vpack.c.b16 %v105, %v103
  %v152 = vpack.c.b16 %v106, %v104
  %v153 = vpack.c.b16 %v109, %v107
  %v154 = vpack.c.b16 %v110, %v108
  %v155 = vpack.c.b16 %v113, %v111
  %v156 = vpack.c.b16 %v114, %v112
  %v157 = vpack.c.b16 %v117, %v115
  %v158 = vpack.c.b16 %v118, %v116
  %v159 = vpack.c.b16 %v121, %v119
  %v160 = vpack.c.b16 %v122, %v120
  %v161 = vpack.c.b16 %v125, %v123
  %v162 = vpack.c.b16 %v126, %v124
  %v163 = vpack.c.b16 %v129, %v127
  %v164 = vpack.c.b16 %v130, %v128
  %v165 = vpack.c.b16 %v133, %v131
  %v166 = vpack.c.b16 %v134, %v132
  %v167 = vpack.c.b16 %v137, %v135
  %v168 = vpack.c.b16 %v138, %v136
  %v169 = vpack.c.b16 %v141, %v139
  %v170 = vpack.c.b16 %v142, %v140
  %v171 = vpack.c.b16 %v145, %v143
  %v172 = vpack.c.b16 %v146, %v144
  %v173 = vpack.c.b16 %v149, %v147
  %v174 = vpack.c.b16 %v150, %v148
  %vm199 = vcmask 523264
  %v201 = vsel %vm199, %v74, 0
  %v204 = vsel %vm199, %v76, 0
  %206 = vmatprep.subr.bf16.mxu0 %v152
  %207 = vmatpush1.bf16.msra.mxu0 %v151
  %208 = vmatprep.subr.bf16.mxu0 %v154
  %209 = vmatpush1.bf16.msra.mxu0 %v153
  %210 = vmatprep.subr.bf16.mxu0 %v156
  %211 = vmatpush1.bf16.msra.mxu0 %v155
  %212 = vmatprep.subr.bf16.mxu0 %v158
  %213 = vmatpush1.bf16.msra.mxu0 %v157
  %214 = vmatprep.subr.bf16.mxu0 %v160
  %215 = vmatpush1.bf16.msra.mxu0 %v159
  %216 = vmatprep.subr.bf16.mxu0 %v162
  %217 = vmatpush1.bf16.msra.mxu0 %v161
  %218 = vmatprep.subr.bf16.mxu0 %v164
  %219 = vmatpush1.bf16.msra.mxu0 %v163
  %220 = vmatprep.subr.bf16.mxu0 %v166
  %221 = vmatpush1.bf16.msra.mxu0 %v165
  %222 = vmatprep.subr.bf16.mxu0 %v168
  %223 = vmatpush1.bf16.msra.mxu0 %v167
  %224 = vmatprep.subr.bf16.mxu0 %v170
  %225 = vmatpush1.bf16.msra.mxu0 %v169
  %226 = vmatprep.subr.bf16.mxu0 %v172
  %227 = vmatpush1.bf16.msra.mxu0 %v171
  %228 = vmatprep.subr.bf16.mxu0 %v174
  %229 = vmatpush1.bf16.msra.mxu0 %v173
  %230 = vmatprep.subr.bf16.mxu0 0
  %231 = vmatpush1.bf16.msra.mxu0 0
  %232 = vmatprep.subr.bf16.mxu0 0
  %233 = vmatpush1.bf16.msra.mxu0 0
  %234 = vmatprep.subr.bf16.mxu0 0
  %235 = vmatpush1.bf16.msra.mxu0 0
  %236 = vmatprep.subr.bf16.mxu0 0
  %237 = vmatpush1.bf16.msra.mxu0 0
  %238 = vmatprep.mubr.bf16.mxu0 %v201
  %239 = vmatmul.mubr.bf16.gmra.mrb[0].mxu0 %v73
  %v240 = vpop.f32.mrb[0].mxu0
  %v241 = vadd.f32 0.0, %v240
  %v242 = vpop.f32.mrb[0].mxu0
  %v243 = vadd.f32 0.0, %v242
  %v244 = vpop.f32.mrb[0].mxu0
  %v245 = vadd.f32 0.0, %v244
  %v246 = vpop.f32.mrb[0].mxu0
  %v247 = vadd.f32 0.0, %v246
  %248 = vmatprep.mubr.bf16.mxu0 %v204
  %249 = vmatmul.mubr.bf16.gmra.mrb[0].mxu0 %v75
  %v250 = vpop.f32.mrb[0].mxu0
  %v251 = vadd.f32 0.0, %v250
  %v252 = vpop.f32.mrb[0].mxu0
  %v253 = vadd.f32 0.0, %v252
  %v254 = vpop.f32.mrb[0].mxu0
  %v255 = vadd.f32 0.0, %v254
  %v256 = vpop.f32.mrb[0].mxu0
  %v257 = vadd.f32 0.0, %v256
  %258 = vdwg.mxu0
  %v259 = vld [vmem:[%s3] sm:$0x1]
  %v260 = vld [vmem:[%s4] sm:$0x1]
  %v261 = vadd.f32 %v241, %v245
  %v262 = vadd.f32 %v261, %v251
  %v263 = vadd.f32 %v262, %v255
  %v264 = vrot.slane %v263, 4
  %v265 = vadd.f32 %v263, %v264
  %v266 = vrot.slane %v265, 2
  %v267 = vadd.f32 %v265, %v266
  %v268 = vrot.slane %v267, 1
  %v269 = vadd.f32 %v267, %v268
  %v270 = vmul.f32 %v241, %v241
  %v271 = vmul.f32 %v245, %v245
  %v272 = vmul.f32 %v251, %v251
  %v273 = vmul.f32 %v255, %v255
  %v274 = vadd.f32 %v270, %v271
  %v275 = vadd.f32 %v274, %v272
  %v276 = vadd.f32 %v275, %v273
  %v277 = vrot.slane %v276, 4
  %v278 = vadd.f32 %v276, %v277
  %v279 = vrot.slane %v278, 2
  %v280 = vadd.f32 %v278, %v279
  %v281 = vrot.slane %v280, 1
  %v282 = vadd.f32 %v280, %v281
  %vm283 = vcmask 1040384
  %v284 = vsel %vm283, %v269, %v282
  %285 = vrot.lane.b32.xlu0 %v284, 8
  %v286 = vpop.permute.xlu0 %285
  %v287 = vadd.f32 %v284, %v286
  %288 = vrot.lane.b32.xlu0 %v287, 16
  %v289 = vpop.permute.xlu0 %288
  %v290 = vadd.f32 %v287, %v289
  %291 = vrot.lane.b32.xlu0 %v290, 32
  %v292 = vpop.permute.xlu0 %291
  %v293 = vadd.f32 %v290, %v292
  %294 = vrot.lane.b32.xlu0 %v293, 64
  %v295 = vpop.permute.xlu0 %294
  %v296 = vadd.f32 %v293, %v295
  %v297 = vmul.f32 %v296, 0.001953125
  %v298 = vmul.f32 %v297, %v297
  %v300 = vrot.slane %v298, 7
  %v302 = vsub.f32 %v297, %v300
  %v303 = vadd.f32 %v302, 1e-05
  %v304 = vrsqrt.pop %v303
  %v307 = vunpack.c.l.s4 1966171168
  %v308 = vunpack.c.0.s8 %v307
  %v309 = vlaneseq
  %v310 = vshrl.u32 %v309, 7
  %v311 = vsub.s32 %v308, %v310
  %v312 = vrot.slane %v304, %v311
  %v313 = vcombine.high %v312, %v312
  %v315 = vunpack.c.l.s4 1966171168
  %v316 = vunpack.c.0.s8 %v315
  %v317 = vlaneseq
  %v318 = vshrl.u32 %v317, 7
  %v319 = vsub.s32 %v316, %v318
  %v320 = vrot.slane %v313, %v319
  %v322 = vmul.f32 %v259, %v320
  %v323 = vmul.f32 %v297, %v322
  %v324 = vsub.f32 %v260, %v323
  %v326 = vlaneseq
  %v327 = vshrl.u32 %v326, 7
  %v328 = vsub.s32 0, %v327
  %v329 = vrot.slane %v322, %v328
  %v331 = vmul.f32 %v241, %v329
  %v332 = vmul.f32 %v245, %v329
  %v333 = vmul.f32 %v251, %v329
  %v334 = vmul.f32 %v255, %v329
  %v336 = vlaneseq
  %v337 = vshrl.u32 %v336, 7
  %v338 = vsub.s32 0, %v337
  %v339 = vrot.slane %v324, %v338
  %v341 = vadd.f32 %v331, %v339
  %v342 = vadd.f32 %v332, %v339
  %v343 = vadd.f32 %v333, %v339
  %v344 = vadd.f32 %v334, %v339
  %vm345 = vcmp.gt.f32.partialorder %v341, 0.0
  %vm346 = vcmp.gt.f32.partialorder %v342, 0.0
  %vm347 = vcmp.gt.f32.partialorder %v343, 0.0
  %vm348 = vcmp.gt.f32.partialorder %v344, 0.0
  %v349 = vmul.f32 %v341, 0.2
  %v350 = vmul.f32 %v342, 0.2
  %v351 = vmul.f32 %v343, 0.2
  %v352 = vmul.f32 %v344, 0.2
  %v353 = vsel %vm345, %v341, %v349
  %v354 = vsel %vm346, %v342, %v350
  %v355 = vsel %vm347, %v343, %v351
  %v356 = vsel %vm348, %v344, %v352
  %v357 = vld [vmem:[%s7] sm:$0x1]
  %v358 = vld [vmem:[%s8] sm:$0x1]
  %v359 = vadd.f32 %v243, %v247
  %v360 = vadd.f32 %v359, %v253
  %v361 = vadd.f32 %v360, %v257
  %v362 = vrot.slane %v361, 4
  %v363 = vadd.f32 %v361, %v362
  %v364 = vrot.slane %v363, 2
  %v365 = vadd.f32 %v363, %v364
  %v366 = vrot.slane %v365, 1
  %v367 = vadd.f32 %v365, %v366
  %v368 = vmul.f32 %v243, %v243
  %v369 = vmul.f32 %v247, %v247
  %v370 = vmul.f32 %v253, %v253
  %v371 = vmul.f32 %v257, %v257
  %v372 = vadd.f32 %v368, %v369
  %v373 = vadd.f32 %v372, %v370
  %v374 = vadd.f32 %v373, %v371
  %v375 = vrot.slane %v374, 4
  %v376 = vadd.f32 %v374, %v375
  %v377 = vrot.slane %v376, 2
  %v378 = vadd.f32 %v376, %v377
  %v379 = vrot.slane %v378, 1
  %v380 = vadd.f32 %v378, %v379
  %v381 = vsel %vm283, %v367, %v380
  %382 = vrot.lane.b32.xlu0 %v381, 8
  %v383 = vpop.permute.xlu0 %382
  %v384 = vadd.f32 %v381, %v383
  %385 = vrot.lane.b32.xlu0 %v384, 16
  %v386 = vpop.permute.xlu0 %385
  %v387 = vadd.f32 %v384, %v386
  %388 = vrot.lane.b32.xlu0 %v387, 32
  %v389 = vpop.permute.xlu0 %388
  %v390 = vadd.f32 %v387, %v389
  %391 = vrot.lane.b32.xlu0 %v390, 64
  %v392 = vpop.permute.xlu0 %391
  %v393 = vadd.f32 %v390, %v392
  %v394 = vmul.f32 %v393, 0.001953125
  %v395 = vmul.f32 %v394, %v394
  %v397 = vrot.slane %v395, 7
  %v399 = vsub.f32 %v394, %v397
  %v400 = vadd.f32 %v399, 1e-05
  %v401 = vrsqrt.pop %v400
  %v404 = vunpack.c.l.s4 1966171168
  %v405 = vunpack.c.0.s8 %v404
  %v406 = vlaneseq
  %v407 = vshrl.u32 %v406, 7
  %v408 = vsub.s32 %v405, %v407
  %v409 = vrot.slane %v401, %v408
  %v410 = vcombine.high %v409, %v409
  %v412 = vunpack.c.l.s4 1966171168
  %v413 = vunpack.c.0.s8 %v412
  %v414 = vlaneseq
  %v415 = vshrl.u32 %v414, 7
  %v416 = vsub.s32 %v413, %v415
  %v417 = vrot.slane %v410, %v416
  %v419 = vmul.f32 %v357, %v417
  %v420 = vmul.f32 %v394, %v419
  %v421 = vsub.f32 %v358, %v420
  %v423 = vlaneseq
  %v424 = vshrl.u32 %v423, 7
  %v425 = vsub.s32 0, %v424
  %v426 = vrot.slane %v419, %v425
  %v428 = vmul.f32 %v243, %v426
  %v429 = vmul.f32 %v247, %v426
  %v430 = vmul.f32 %v253, %v426
  %v431 = vmul.f32 %v257, %v426
  %v433 = vlaneseq
  %v434 = vshrl.u32 %v433, 7
  %v435 = vsub.s32 0, %v434
  %v436 = vrot.slane %v421, %v435
  %v438 = vadd.f32 %v428, %v436
  %v439 = vadd.f32 %v429, %v436
  %v440 = vadd.f32 %v430, %v436
  %v441 = vadd.f32 %v431, %v436
  %v442 = vlaneseq
  %v443 = vshrl.u32 %v442, 7
  %v444 = vadd.s32 %v443, 8
  %v445 = vadd.s32 %v443, 16
  %v446 = vadd.s32 %v443, 24
  %vm447 = vcmp.lt.s32.totalorder %v443, 0
  %v448 = vsub.s32 0, %v443
  %v449 = vsel %vm447, %v448, %v443
  %v450 = vshrl.u32 %v449, 4
  %v451 = vand.u32 %v449, 15
  %v452 = vsub.s32 0, %v451
  %v453 = vsel %vm447, %v452, %v451
  %vm454 = vcmp.lt.s32.totalorder %v444, 0
  %v455 = vsub.s32 0, %v444
  %v456 = vsel %vm454, %v455, %v444
  %v457 = vshrl.u32 %v456, 4
  %v458 = vand.u32 %v456, 15
  %v459 = vsub.s32 0, %v458
  %v460 = vsel %vm454, %v459, %v458
  %vm461 = vcmp.lt.s32.totalorder %v445, 0
  %v462 = vsub.s32 0, %v445
  %v463 = vsel %vm461, %v462, %v445
  %v464 = vshrl.u32 %v463, 4
  %v465 = vand.u32 %v463, 15
  %v466 = vsub.s32 0, %v465
  %v467 = vsel %vm461, %v466, %v465
  %vm468 = vcmp.lt.s32.totalorder %v446, 0
  %v469 = vsub.s32 0, %v446
  %v470 = vsel %vm468, %v469, %v446
  %v471 = vshrl.u32 %v470, 4
  %v472 = vand.u32 %v470, 15
  %v473 = vsub.s32 0, %v472
  %v474 = vsel %vm468, %v473, %v472
  %vm475 = vcmp.ne.s32.totalorder %v453, 0
  %vm476 = vcmp.ne.s32.totalorder %v460, 0
  %vm477 = vcmp.ne.s32.totalorder %v467, 0
  %vm478 = vcmp.ne.s32.totalorder %v474, 0
  %vm479 = vcmp.lt.s32.totalorder %v453, 0
  %vm480 = vcmp.lt.s32.totalorder %v460, 0
  %vm481 = vcmp.lt.s32.totalorder %v467, 0
  %vm482 = vcmp.lt.s32.totalorder %v474, 0
  %vm483 = vmand %vm479, %vm475
  %vm484 = vmand %vm480, %vm476
  %vm485 = vmand %vm481, %vm477
  %vm486 = vmand %vm482, %vm478
  %v487 = vadd.s32 %v453, 16
  %v488 = vadd.s32 %v460, 16
  %v489 = vadd.s32 %v467, 16
  %v490 = vadd.s32 %v474, 16
  %v491 = vsel %vm483, %v487, %v453
  %v492 = vsel %vm484, %v488, %v460
  %v493 = vsel %vm485, %v489, %v467
  %v494 = vsel %vm486, %v490, %v474
  %vm495 = vcmp.gt.s32.totalorder %v491, 0
  %vm496 = vcmp.gt.s32.totalorder %v492, 0
  %vm497 = vcmp.gt.s32.totalorder %v493, 0
  %vm498 = vcmp.gt.s32.totalorder %v494, 0
  %v499 = vrot.slane %v353, 7
  %v500 = vrot.slane %v354, 7
  %v501 = vrot.slane %v355, 7
  %v502 = vrot.slane %v356, 7
  %vm503 = vcmp.lt.s32.totalorder %v443, 1
  %v504 = vsel %vm503, %v501, %v502
  %v505 = vsel %vm503, %v500, %v501
  %v506 = vsel %vm503, %v499, %v500
  %v507 = vsel %vm503, %v502, %v499
  %v508 = vsel %vm495, %v507, 0.0
  %v509 = vsel %vm496, %v506, 0.0
  %v510 = vsel %vm497, %v505, 0.0
  %v511 = vsel %vm498, %v504, 0.0
  %vm512 = vcmp.lt.s32.totalorder %v491, 15
  %vm513 = vcmp.lt.s32.totalorder %v492, 15
  %vm514 = vcmp.lt.s32.totalorder %v493, 15
  %vm515 = vcmp.lt.s32.totalorder %v494, 15
  %v516 = vrot.slane %v353, 1
  %v517 = vrot.slane %v354, 1
  %v518 = vrot.slane %v355, 1
  %v519 = vrot.slane %v356, 1
  %vm520 = vcmp.lt.s32.totalorder %v443, 7
  %v521 = vsel %vm520, %v518, %v519
  %v522 = vsel %vm520, %v517, %v518
  %v523 = vsel %vm520, %v516, %v517
  %v524 = vsel %vm520, %v519, %v516
  %v525 = vsel %vm512, %v523, 0.0
  %v526 = vsel %vm513, %v522, 0.0
  %v527 = vsel %vm514, %v521, 0.0
  %v528 = vsel %vm515, %v524, 0.0
  %v529 = vpack.c.bf16 %v509, %v508
  %v530 = vpack.c.bf16 %v354, %v353
  %v531 = vpack.c.bf16 %v526, %v525
  %v532 = vpack.c.bf16 %v511, %v510
  %v533 = vpack.c.bf16 %v356, %v355
  %v534 = vpack.c.bf16 %v528, %v527
  %v535 = vld [vmem:[%s2] sm:$0xf]
  %v536 = vld [vmem:[%s2 + $0x4] sm:$0xf]
  %v537 = vld [vmem:[%s2 + $0x8] sm:$0xf]
  %v538 = vld [vmem:[%s2 + $0xc] sm:$0xf]
  %v539 = vld [vmem:[%s2 + $0x10] sm:$0xf]
  %v540 = vld [vmem:[%s2 + $0x14] sm:$0xf]
  %v541 = vld [vmem:[%s2 + $0x18] sm:$0xf]
  %v542 = vld [vmem:[%s2 + $0x1c] sm:$0xf]
  %v543 = vld [vmem:[%s2 + $0x20] sm:$0xf]
  %v544 = vld [vmem:[%s2 + $0x24] sm:$0xf]
  %v545 = vld [vmem:[%s2 + $0x28] sm:$0xf]
  %v546 = vld [vmem:[%s2 + $0x2c] sm:$0xf]
  %v547 = vld [vmem:[%s2 + $0x30] sm:$0xf]
  %v548 = vld [vmem:[%s2 + $0x34] sm:$0xf]
  %v549 = vld [vmem:[%s2 + $0x38] sm:$0xf]
  %v550 = vld [vmem:[%s2 + $0x3c] sm:$0xf]
  %v551 = vld [vmem:[%s2 + $0x40] sm:$0xf]
  %v552 = vld [vmem:[%s2 + $0x44] sm:$0xf]
  %v553 = vld [vmem:[%s2 + $0x48] sm:$0xf]
  %v554 = vld [vmem:[%s2 + $0x4c] sm:$0xf]
  %v555 = vld [vmem:[%s2 + $0x50] sm:$0xf]
  %v556 = vld [vmem:[%s2 + $0x54] sm:$0xf]
  %v557 = vld [vmem:[%s2 + $0x58] sm:$0xf]
  %v558 = vld [vmem:[%s2 + $0x5c] sm:$0xf]
  %v559 = vld [vmem:[%s2 + $0x60] sm:$0xf]
  %v560 = vld [vmem:[%s2 + $0x64] sm:$0xf]
  %v561 = vld [vmem:[%s2 + $0x68] sm:$0xf]
  %v562 = vld [vmem:[%s2 + $0x6c] sm:$0xf]
  %v563 = vld [vmem:[%s2 + $0x70] sm:$0xf]
  %v564 = vld [vmem:[%s2 + $0x74] sm:$0xf]
  %v565 = vld [vmem:[%s2 + $0x78] sm:$0xf]
  %v566 = vld [vmem:[%s2 + $0x7c] sm:$0xf]
  %v567 = vld [vmem:[%s2 + $0x80] sm:$0xf]
  %v568 = vld [vmem:[%s2 + $0x84] sm:$0xf]
  %v569 = vld [vmem:[%s2 + $0x88] sm:$0xf]
  %v570 = vld [vmem:[%s2 + $0x8c] sm:$0xf]
  %v571 = vld [vmem:[%s2 + $0x90] sm:$0xf]
  %v572 = vld [vmem:[%s2 + $0x94] sm:$0xf]
  %v573 = vld [vmem:[%s2 + $0x98] sm:$0xf]
  %v574 = vld [vmem:[%s2 + $0x9c] sm:$0xf]
  %v575 = vld [vmem:[%s2 + $0xa0] sm:$0xf]
  %v576 = vld [vmem:[%s2 + $0xa4] sm:$0xf]
  %v577 = vld [vmem:[%s2 + $0xa8] sm:$0xf]
  %v578 = vld [vmem:[%s2 + $0xac] sm:$0xf]
  %v579 = vld [vmem:[%s2 + $0xb0] sm:$0xf]
  %v580 = vld [vmem:[%s2 + $0xb4] sm:$0xf]
  %v581 = vld [vmem:[%s2 + $0xb8] sm:$0xf]
  %v582 = vld [vmem:[%s2 + $0xbc] sm:$0xf]
  %v631 = vunpack.c.l.b16 %v535
  %v632 = vunpack.c.l.b16 %v536
  %v633 = vunpack.c.l.b16 %v537
  %v634 = vunpack.c.l.b16 %v538
  %v635 = vunpack.c.l.b16 %v539
  %v636 = vunpack.c.l.b16 %v540
  %v637 = vunpack.c.l.b16 %v541
  %v638 = vunpack.c.l.b16 %v542
  %v639 = vunpack.c.l.b16 %v543
  %v640 = vunpack.c.l.b16 %v544
  %v641 = vunpack.c.l.b16 %v545
  %v642 = vunpack.c.l.b16 %v546
  %v643 = vunpack.c.l.b16 %v547
  %v644 = vunpack.c.l.b16 %v548
  %v645 = vunpack.c.l.b16 %v549
  %v646 = vunpack.c.l.b16 %v550
  %v647 = vunpack.c.l.b16 %v551
  %v648 = vunpack.c.l.b16 %v552
  %v649 = vunpack.c.l.b16 %v553
  %v650 = vunpack.c.l.b16 %v554
  %v651 = vunpack.c.l.b16 %v555
  %v652 = vunpack.c.l.b16 %v556
  %v653 = vunpack.c.l.b16 %v557
  %v654 = vunpack.c.l.b16 %v558
  %v655 = vunpack.c.l.b16 %v559
  %v656 = vunpack.c.l.b16 %v560
  %v657 = vunpack.c.l.b16 %v561
  %v658 = vunpack.c.l.b16 %v562
  %v659 = vunpack.c.l.b16 %v563
  %v660 = vunpack.c.l.b16 %v564
  %v661 = vunpack.c.l.b16 %v565
  %v662 = vunpack.c.l.b16 %v566
  %v663 = vunpack.c.l.b16 %v567
  %v664 = vunpack.c.l.b16 %v568
  %v665 = vunpack.c.l.b16 %v569
  %v666 = vunpack.c.l.b16 %v570
  %v667 = vunpack.c.l.b16 %v571
  %v668 = vunpack.c.l.b16 %v572
  %v669 = vunpack.c.l.b16 %v573
  %v670 = vunpack.c.l.b16 %v574
  %v671 = vunpack.c.l.b16 %v575
  %v672 = vunpack.c.l.b16 %v576
  %v673 = vunpack.c.l.b16 %v577
  %v674 = vunpack.c.l.b16 %v578
  %v675 = vunpack.c.l.b16 %v579
  %v676 = vunpack.c.l.b16 %v580
  %v677 = vunpack.c.l.b16 %v581
  %v678 = vunpack.c.l.b16 %v582
  %v679 = vpack.c.b16 %v632, %v631
  %v680 = vpack.c.b16 %v634, %v633
  %v681 = vpack.c.b16 %v636, %v635
  %v682 = vpack.c.b16 %v638, %v637
  %v683 = vpack.c.b16 %v640, %v639
  %v684 = vpack.c.b16 %v642, %v641
  %v685 = vpack.c.b16 %v644, %v643
  %v686 = vpack.c.b16 %v646, %v645
  %v687 = vpack.c.b16 %v648, %v647
  %v688 = vpack.c.b16 %v650, %v649
  %v689 = vpack.c.b16 %v652, %v651
  %v690 = vpack.c.b16 %v654, %v653
  %v691 = vpack.c.b16 %v656, %v655
  %v692 = vpack.c.b16 %v658, %v657
  %v693 = vpack.c.b16 %v660, %v659
  %v694 = vpack.c.b16 %v662, %v661
  %v695 = vpack.c.b16 %v664, %v663
  %v696 = vpack.c.b16 %v666, %v665
  %v697 = vpack.c.b16 %v668, %v667
  %v698 = vpack.c.b16 %v670, %v669
  %v699 = vpack.c.b16 %v672, %v671
  %v700 = vpack.c.b16 %v674, %v673
  %v701 = vpack.c.b16 %v676, %v675
  %v702 = vpack.c.b16 %v678, %v677
  %727 = vmatprep.subr.bf16.mxu0 0
  %728 = vmatpush1.bf16.msra.mxu0 %v679
  %729 = vmatprep.subr.bf16.mxu0 0
  %730 = vmatpush1.bf16.msra.mxu0 %v680
  %731 = vmatprep.subr.bf16.mxu0 0
  %732 = vmatpush1.bf16.msra.mxu0 %v681
  %733 = vmatprep.subr.bf16.mxu0 0
  %734 = vmatpush1.bf16.msra.mxu0 %v682
  %735 = vmatprep.subr.bf16.mxu0 0
  %736 = vmatpush1.bf16.msra.mxu0 %v683
  %737 = vmatprep.subr.bf16.mxu0 0
  %738 = vmatpush1.bf16.msra.mxu0 %v684
  %739 = vmatprep.subr.bf16.mxu0 0
  %740 = vmatpush1.bf16.msra.mxu0 %v685
  %741 = vmatprep.subr.bf16.mxu0 0
  %742 = vmatpush1.bf16.msra.mxu0 %v686
  %743 = vmatprep.subr.bf16.mxu0 0
  %744 = vmatpush1.bf16.msra.mxu0 %v687
  %745 = vmatprep.subr.bf16.mxu0 0
  %746 = vmatpush1.bf16.msra.mxu0 %v688
  %747 = vmatprep.subr.bf16.mxu0 0
  %748 = vmatpush1.bf16.msra.mxu0 %v689
  %749 = vmatprep.subr.bf16.mxu0 0
  %750 = vmatpush1.bf16.msra.mxu0 %v690
  %751 = vmatprep.subr.bf16.mxu0 0
  %752 = vmatpush1.bf16.msra.mxu0 %v691
  %753 = vmatprep.subr.bf16.mxu0 0
  %754 = vmatpush1.bf16.msra.mxu0 %v692
  %755 = vmatprep.subr.bf16.mxu0 0
  %756 = vmatpush1.bf16.msra.mxu0 %v693
  %757 = vmatprep.subr.bf16.mxu0 0
  %758 = vmatpush1.bf16.msra.mxu0 %v694
  %759 = vmatprep.mubr.bf16.mxu0 %v530
  %760 = vmatmul.mubr.bf16.gmra.mrb[0].mxu0 %v529
  %v761 = vpop.f32.mrb[0].mxu0
  %v762 = vadd.f32 0.0, %v761
  %v763 = vpop.f32.mrb[0].mxu0
  %v764 = vpop.f32.mrb[0].mxu0
  %v765 = vadd.f32 0.0, %v764
  %v766 = vpop.f32.mrb[0].mxu0
  %767 = vmatprep.mubr.bf16.mxu0 %v533
  %768 = vmatmul.mubr.bf16.gmra.mrb[0].mxu0 %v532
  %v769 = vpop.f32.mrb[0].mxu0
  %v770 = vadd.f32 0.0, %v769
  %v771 = vpop.f32.mrb[0].mxu0
  %v772 = vpop.f32.mrb[0].mxu0
  %v773 = vadd.f32 0.0, %v772
  %v774 = vpop.f32.mrb[0].mxu0
  %775 = vdwg.mxu0
  %776 = vmatprep.subr.bf16.mxu0 0
  %777 = vmatpush1.bf16.msra.mxu0 %v695
  %778 = vmatprep.subr.bf16.mxu0 0
  %779 = vmatpush1.bf16.msra.mxu0 %v696
  %780 = vmatprep.subr.bf16.mxu0 0
  %781 = vmatpush1.bf16.msra.mxu0 %v697
  %782 = vmatprep.subr.bf16.mxu0 0
  %783 = vmatpush1.bf16.msra.mxu0 %v698
  %784 = vmatprep.subr.bf16.mxu0 0
  %785 = vmatpush1.bf16.msra.mxu0 %v699
  %786 = vmatprep.subr.bf16.mxu0 0
  %787 = vmatpush1.bf16.msra.mxu0 %v700
  %788 = vmatprep.subr.bf16.mxu0 0
  %789 = vmatpush1.bf16.msra.mxu0 %v701
  %790 = vmatprep.subr.bf16.mxu0 0
  %791 = vmatpush1.bf16.msra.mxu0 %v702
  %792 = vmatprep.subr.bf16.mxu0 0
  %793 = vmatpush1.bf16.msra.mxu0 0
  %794 = vmatprep.subr.bf16.mxu0 0
  %795 = vmatpush1.bf16.msra.mxu0 0
  %796 = vmatprep.subr.bf16.mxu0 0
  %797 = vmatpush1.bf16.msra.mxu0 0
  %798 = vmatprep.subr.bf16.mxu0 0
  %799 = vmatpush1.bf16.msra.mxu0 0
  %800 = vmatprep.subr.bf16.mxu0 0
  %801 = vmatpush1.bf16.msra.mxu0 0
  %802 = vmatprep.subr.bf16.mxu0 0
  %803 = vmatpush1.bf16.msra.mxu0 0
  %804 = vmatprep.subr.bf16.mxu0 0
  %805 = vmatpush1.bf16.msra.mxu0 0
  %806 = vmatprep.subr.bf16.mxu0 0
  %807 = vmatpush1.bf16.msra.mxu0 0
  %808 = vmatprep.mubr.bf16.mxu0 0
  %809 = vmatmul.mubr.bf16.gmra.mrb[0].mxu0 %v531
  %v810 = vpop.f32.mrb[0].mxu0
  %v811 = vadd.f32 %v762, %v810
  %v812 = vpop.f32.mrb[0].mxu0
  %v813 = vpop.f32.mrb[0].mxu0
  %v814 = vadd.f32 %v765, %v813
  %v815 = vpop.f32.mrb[0].mxu0
  %816 = vmatprep.mubr.bf16.mxu0 0
  %817 = vmatmul.mubr.bf16.gmra.mrb[0].mxu0 %v534
  %v818 = vpop.f32.mrb[0].mxu0
  %v819 = vadd.f32 %v770, %v818
  %v820 = vpop.f32.mrb[0].mxu0
  %v821 = vpop.f32.mrb[0].mxu0
  %v822 = vadd.f32 %v773, %v821
  %v823 = vpop.f32.mrb[0].mxu0
  %824 = vdwg.mxu0
  %v825 = vld [vmem:[%s5] sm:$0x1]
  %v826 = vld [vmem:[%s6] sm:$0x1]
  %v827 = vadd.f32 %v811, %v814
  %v828 = vadd.f32 %v827, %v819
  %v829 = vadd.f32 %v828, %v822
  %v830 = vrot.slane %v829, 4
  %v831 = vadd.f32 %v829, %v830
  %v832 = vrot.slane %v831, 2
  %v833 = vadd.f32 %v831, %v832
  %v834 = vrot.slane %v833, 1
  %v835 = vadd.f32 %v833, %v834
  %v836 = vmul.f32 %v811, %v811
  %v837 = vmul.f32 %v814, %v814
  %v838 = vmul.f32 %v819, %v819
  %v839 = vmul.f32 %v822, %v822
  %v840 = vadd.f32 %v836, %v837
  %v841 = vadd.f32 %v840, %v838
  %v842 = vadd.f32 %v841, %v839
  %v843 = vrot.slane %v842, 4
  %v844 = vadd.f32 %v842, %v843
  %v845 = vrot.slane %v844, 2
  %v846 = vadd.f32 %v844, %v845
  %v847 = vrot.slane %v846, 1
  %v848 = vadd.f32 %v846, %v847
  %v849 = vsel %vm283, %v835, %v848
  %850 = vrot.lane.b32.xlu0 %v849, 8
  %v851 = vpop.permute.xlu0 %850
  %v852 = vadd.f32 %v849, %v851
  %853 = vrot.lane.b32.xlu0 %v852, 16
  %v854 = vpop.permute.xlu0 %853
  %v855 = vadd.f32 %v852, %v854
  %856 = vrot.lane.b32.xlu0 %v855, 32
  %v857 = vpop.permute.xlu0 %856
  %v858 = vadd.f32 %v855, %v857
  %859 = vrot.lane.b32.xlu0 %v858, 64
  %v860 = vpop.permute.xlu0 %859
  %v861 = vadd.f32 %v858, %v860
  %v862 = vmul.f32 %v861, 0.001953125
  %v863 = vmul.f32 %v862, %v862
  %v865 = vrot.slane %v863, 7
  %v867 = vsub.f32 %v862, %v865
  %v868 = vadd.f32 %v867, 1e-05
  %v869 = vrsqrt.pop %v868
  %v872 = vunpack.c.l.s4 1966171168
  %v873 = vunpack.c.0.s8 %v872
  %v874 = vlaneseq
  %v875 = vshrl.u32 %v874, 7
  %v876 = vsub.s32 %v873, %v875
  %v877 = vrot.slane %v869, %v876
  %v878 = vcombine.high %v877, %v877
  %v880 = vunpack.c.l.s4 1966171168
  %v881 = vunpack.c.0.s8 %v880
  %v882 = vlaneseq
  %v883 = vshrl.u32 %v882, 7
  %v884 = vsub.s32 %v881, %v883
  %v885 = vrot.slane %v878, %v884
  %v887 = vmul.f32 %v825, %v885
  %v888 = vmul.f32 %v862, %v887
  %v889 = vsub.f32 %v826, %v888
  %v891 = vlaneseq
  %v892 = vshrl.u32 %v891, 7
  %v893 = vsub.s32 0, %v892
  %v894 = vrot.slane %v887, %v893
  %v896 = vmul.f32 %v811, %v894
  %v897 = vmul.f32 %v814, %v894
  %v898 = vmul.f32 %v819, %v894
  %v899 = vmul.f32 %v822, %v894
  %v901 = vlaneseq
  %v902 = vshrl.u32 %v901, 7
  %v903 = vsub.s32 0, %v902
  %v904 = vrot.slane %v889, %v903
  %v906 = vadd.f32 %v896, %v904
  %v907 = vadd.f32 %v897, %v904
  %v908 = vadd.f32 %v898, %v904
  %v909 = vadd.f32 %v899, %v904
  %v910 = vadd.f32 %v906, %v438
  %v911 = vadd.f32 %v907, %v439
  %v912 = vadd.f32 %v908, %v440
  %v913 = vadd.f32 %v909, %v441
  %vm914 = vcmp.gt.f32.partialorder %v910, 0.0
  %vm915 = vcmp.gt.f32.partialorder %v911, 0.0
  %vm916 = vcmp.gt.f32.partialorder %v912, 0.0
  %vm917 = vcmp.gt.f32.partialorder %v913, 0.0
  %v918 = vmul.f32 %v910, 0.2
  %v919 = vmul.f32 %v911, 0.2
  %v920 = vmul.f32 %v912, 0.2
  %v921 = vmul.f32 %v913, 0.2
  %v922 = vsel %vm914, %v910, %v918
  %v923 = vsel %vm915, %v911, %v919
  %v924 = vsel %vm916, %v912, %v920
  %v925 = vsel %vm917, %v913, %v921
  %926 = vst [vmem:[%s9] sm:$0xff] %v922
  %927 = vst [vmem:[%s9 + $0x8] sm:$0xff] %v923
  %928 = vst [vmem:[%s9 + $0x10] sm:$0xff] %v924
  %929 = vst [vmem:[%s9 + $0x18] sm:$0xff] %v925
  // Predicated region
  $region38: #{residual_block.1} parent=0 // pred_check
    _
  $region39: #{residual_block.1} parent=0 // pred_check_branch
    %931 = sbr.rel (0) target = $region41
  $region40: #{residual_block.1} parent=0 // pred_region
    _
  $region41: #{residual_block.1} parent=0 // pred_fallthru
    _
  // Predicated region
  $region42: #{residual_block.1} parent=0 // pred_check
    _
  $region43: #{residual_block.1} parent=0 // pred_check_branch
    %933 = sbr.rel (0) target = $region45
  $region44: #{residual_block.1} parent=0 // pred_region
    _
  $region45: #{residual_block.1} parent=0 // pred_fallthru
    _

</llo_original>
